<compile_context>
chip_gen: v7x
topology: tpu7x:2x2x1
jax: 0.10.0
libtpu: 0.0.40
codegen_flags: <defaults>
</compile_context>

<pallas_src>
import functools

import jax
import jax.numpy as jnp
from jax.experimental import pallas as pl
from jax.experimental.pallas import tpu as pltpu


def _linear_kernel(x_ref, w_ref, o_ref, acc_ref):
    # x_ref: (tm, tk)   w_ref: (tk, tn)   o_ref: (tm, tn)   acc_ref: (tm, tn) f32
    k = pl.program_id(2)

    @pl.when(k == 0)
    def _():
        acc_ref[...] = jnp.zeros_like(acc_ref)

    acc_ref[...] += jnp.dot(
        x_ref[...], w_ref[...], preferred_element_type=jnp.float32
    )

    @pl.when(k == pl.num_programs(2) - 1)
    def _():
        o_ref[...] = acc_ref[...].astype(o_ref.dtype)


@functools.lru_cache(maxsize=1)
def _physical_vmem_bytes():
    """Per-core VMEM capacity; conservative 64 MiB (v7x) fallback if the query fails."""
    try:
        return int(pltpu.get_tpu_info().vmem_capacity_bytes)
    except Exception:
        return 64 * 1024 * 1024


def _tile_vmem_bytes(tm, tn, tk, in_itemsize, out_itemsize):
    # double-buffered x & w input tiles + f32 accumulator + double-buffered output tile
    return (
        2 * (tm * tk + tk * tn) * in_itemsize
        + tm * tn * 4
        + 2 * tm * tn * out_itemsize
    )


def _select_tiles(M, N, K, in_itemsize, out_itemsize, budget, tm, tn, tk):
    """Clamp tiles to the problem and shrink them until they fit the VMEM budget.

    Small dims use the full extent (always a legal block shape).  Large dims use
    the 128-aligned targets; the shrink loop only halves values that stay
    128-aligned (lane dims) / 8-aligned (sublane dim)."""
    tm_ = M if M <= tm else tm
    tn_ = N if N <= tn else tn
    tk_ = K if K <= tk else tk
    while _tile_vmem_bytes(tm_, tn_, tk_, in_itemsize, out_itemsize) > budget:
        if tk_ >= 512 and tk_ % 256 == 0:
            tk_ //= 2
        elif tn_ >= 512 and tn_ % 256 == 0:
            tn_ //= 2
        elif tm_ >= 512 and tm_ % 16 == 0:
            tm_ //= 2
        else:
            break
    return tm_, tn_, tk_


@functools.partial(jax.jit, static_argnames=("tm", "tn", "tk"))
def linear_forward(x, w, *, tm=1024, tn=1024, tk=1024):
    """y = einsum('o i, ... i -> ... o', w, x) via a tiled Pallas MXU matmul.

    x: [..., in_features], w: [out_features, in_features]
    """
    *lead, K = x.shape
    N, K_w = w.shape
    assert K == K_w, "in_features mismatch"

    x_flat = x.reshape(-1, K)
    M = x_flat.shape[0]

    out_dtype = jnp.result_type(x.dtype, w.dtype)
    in_itemsize = max(jnp.dtype(x.dtype).itemsize, jnp.dtype(w.dtype).itemsize)
    out_itemsize = jnp.dtype(out_dtype).itemsize

    phys_vmem = _physical_vmem_bytes()
    budget = int(0.75 * phys_vmem)
    tm_, tn_, tk_ = _select_tiles(
        M, N, K, in_itemsize, out_itemsize, budget, tm, tn, tk
    )

    # Present the weight as [K, N]: one transpose outside the grid loop, so the
    # per-step MXU op is a plain tile matmul (no in-kernel XLU transpose).
    # TODO(synk): a persistent module should store the [K, N] weight once
    # instead of transposing on every forward call.
    w_t = w.T

    # Zero-pad ragged K up to a multiple of tk_ (zeros contribute nothing to the
    # accumulation).  Ragged M/N edge blocks are fine: out-of-bounds output
    # stores are dropped, and garbage input rows/cols only feed dropped outputs.
    K_pad = -(-K // tk_) * tk_
    if K_pad != K:
        x_flat = jnp.pad(x_flat, ((0, 0), (0, K_pad - K)))
        w_t = jnp.pad(w_t, ((0, K_pad - K), (0, 0)))

    grid = (pl.cdiv(M, tm_), pl.cdiv(N, tn_), K_pad // tk_)

    needed = _tile_vmem_bytes(tm_, tn_, tk_, in_itemsize, out_itemsize)
    vmem_limit = int(min(0.85 * phys_vmem, max(2 * needed, 32 * 1024 * 1024)))
    vmem_limit = max(vmem_limit, needed)

    cost = pl.CostEstimate(
        flops=2 * M * N * K_pad,
        transcendentals=0,
        bytes_accessed=(
            M * K_pad * in_itemsize * grid[1]      # x re-read once per N tile
            + K_pad * N * in_itemsize * grid[0]    # w re-read once per M tile
            + M * N * out_itemsize
        ),
    )

    out_flat = pl.pallas_call(
        _linear_kernel,
        out_shape=jax.ShapeDtypeStruct((M, N), out_dtype),
        grid_spec=pltpu.PrefetchScalarGridSpec(
            num_scalar_prefetch=0,
            grid=grid,
            in_specs=[
                pl.BlockSpec((tm_, tk_), lambda i, j, k: (i, k)),  # x tile
                pl.BlockSpec((tk_, tn_), lambda i, j, k: (k, j)),  # w tile ([K, N])
            ],
            out_specs=pl.BlockSpec((tm_, tn_), lambda i, j, k: (i, j)),
            scratch_shapes=[pltpu.VMEM((tm_, tn_), jnp.float32)],
        ),
        compiler_params=pltpu.CompilerParams(
            dimension_semantics=("parallel", "parallel", "arbitrary"),
            vmem_limit_bytes=int(vmem_limit),
        ),
        cost_estimate=cost,
    )(x_flat, w_t)

    return out_flat.reshape(*lead, N)


def init_linear_params(key, in_features, out_features, dtype=jnp.float32):
    # Matches torch.nn.init.trunc_normal_(w, std=1, a=-3, b=3).
    w = jax.random.truncated_normal(
        key, -3.0, 3.0, shape=(out_features, in_features), dtype=jnp.float32
    )
    return w.astype(dtype)


def _check(y, y_ref, atol=5e-2, rtol=2e-2):
    assert y.shape == y_ref.shape
    assert jnp.allclose(y, y_ref, atol=atol, rtol=rtol), (
        float(jnp.max(jnp.abs(y - y_ref)))
    )


if __name__ == "__main__":
    key = jax.random.PRNGKey(0)
    keys = jax.random.split(key, 8)

    # 1) Small shapes implied by the module: batch=2, seq=8, in=32, out=64.
    batch, seq, in_features, out_features = 2, 8, 32, 64
    w = init_linear_params(keys[0], in_features, out_features)          # [out, in]
    x = jax.random.normal(keys[1], (batch, seq, in_features), jnp.float32)
    y = jax.block_until_ready(linear_forward(x, w))
    _check(y, jnp.einsum("oi,...i->...o", w, x))

    # 2) Tiled path with ragged M/N edges and a multi-step K reduction
    #    (M=300, K=1024, N=640 with explicit 128/256/256 tiles).
    in2, out2 = 1024, 640
    w2 = init_linear_params(keys[2], in2, out2)
    x2 = jax.random.normal(keys[3], (3, 100, in2), jnp.float32)
    y2 = jax.block_until_ready(linear_forward(x2, w2, tm=128, tn=256, tk=256))
    _check(y2, jnp.einsum("oi,...i->...o", w2, x2))

    # 3) Ragged K (K=200, tk=128) -> exercises the zero-padding path.
    in3, out3 = 200, 96
    w3 = init_linear_params(keys[4], in3, out3)
    x3 = jax.random.normal(keys[5], (4, 16, in3), jnp.float32)
    y3 = jax.block_until_ready(linear_forward(x3, w3, tm=64, tn=96, tk=128))
    _check(y3, jnp.einsum("oi,...i->...o", w3, x3))

    # 4) Default (large-tile) fast path on a moderate GEMM: M=2048, K=2048, N=1024.
    in4, out4 = 2048, 1024
    w4 = init_linear_params(keys[6], in4, out4)
    x4 = jax.random.normal(keys[7], (8, 256, in4), jnp.float32)
    y4 = jax.block_until_ready(linear_forward(x4, w4))
    _check(y4, jnp.einsum("oi,...i->...o", w4, x4))

    print("KERNEL_OK")
</pallas_src>

<mosaic_0001>
module attributes {stable_mosaic.version = 11 : i64} {
  func.func @_linear_kernel(%arg0: i32, %arg1: i32, %arg2: i32, %arg3: memref<16x32xf32, #tpu.memory_space<vmem>>, %arg4: memref<32x64xf32, #tpu.memory_space<vmem>>, %arg5: memref<16x64xf32, #tpu.memory_space<vmem>>, %arg6: memref<16x64xf32, #tpu.memory_space<vmem>>) attributes {dimension_semantics = [#tpu.dimension_semantics<parallel>, #tpu.dimension_semantics<parallel>, #tpu.dimension_semantics<arbitrary>], iteration_bounds = array<i64: 1, 1, 1>, scalar_prefetch = 0 : i64, scratch_operands = 1 : i64, tpu.core_type = #tpu.core_type<tc>, window_params = [{transform_indices = @transform_0, window_bounds = array<i64: 16, 32>}, {transform_indices = @transform_1, window_bounds = array<i64: 32, 64>}, {transform_indices = @transform_2, window_bounds = array<i64: 16, 64>}]} {
    %c0_i32 = arith.constant 0 : i32
    %0 = arith.cmpi eq, %arg2, %c0_i32 : i32
    %1 = arith.extui %0 : i1 to i32
    %c0_i32_0 = arith.constant 0 : i32
    %2 = arith.cmpi ne, %1, %c0_i32_0 : i32
    scf.if %2 {
      %cst_10 = arith.constant 0.000000e+00 : f32
      %12 = vector.broadcast %cst_10 : f32 to vector<16x64xf32>
      %c0_11 = arith.constant 0 : index
      %c0_12 = arith.constant 0 : index
      %13 = vector.load %arg6[%c0_11, %c0_12] : memref<16x64xf32, #tpu.memory_space<vmem>>, vector<16x64xf32>
      tpu.vector_store %arg6[%c0_11, %c0_12], %12 {strides = array<i32>} : memref<16x64xf32, #tpu.memory_space<vmem>>, vector<16x64xf32>,
    } else {
    }
    %c0 = arith.constant 0 : index
    %c0_1 = arith.constant 0 : index
    %3 = vector.load %arg6[%c0, %c0_1] : memref<16x64xf32, #tpu.memory_space<vmem>>, vector<16x64xf32>
    %c0_2 = arith.constant 0 : index
    %c0_3 = arith.constant 0 : index
    %4 = vector.load %arg3[%c0_2, %c0_3] : memref<16x32xf32, #tpu.memory_space<vmem>>, vector<16x32xf32>
    %c0_4 = arith.constant 0 : index
    %c0_5 = arith.constant 0 : index
    %5 = vector.load %arg4[%c0_4, %c0_5] : memref<32x64xf32, #tpu.memory_space<vmem>>, vector<32x64xf32>
    %cst = arith.constant dense<0.000000e+00> : vector<16x64xf32>
    %6 = tpu.matmul %4, %5, %cst {dimension_numbers = #tpu.dot_dimension_numbers<[1], [0], [0], [1], [0, 0, 1, 1], [], []>} : vector<16x32xf32>, vector<32x64xf32>, vector<16x64xf32> -> vector<16x64xf32>
    %7 = arith.addf %3, %6 : vector<16x64xf32>
    %c0_6 = arith.constant 0 : index
    %c0_7 = arith.constant 0 : index
    %8 = vector.load %arg6[%c0_6, %c0_7] : memref<16x64xf32, #tpu.memory_space<vmem>>, vector<16x64xf32>
    tpu.vector_store %arg6[%c0_6, %c0_7], %7 {strides = array<i32>} : memref<16x64xf32, #tpu.memory_space<vmem>>, vector<16x64xf32>,
    %c0_i32_8 = arith.constant 0 : i32
    %9 = arith.cmpi eq, %arg2, %c0_i32_8 : i32
    %10 = arith.extui %9 : i1 to i32
    %c0_i32_9 = arith.constant 0 : i32
    %11 = arith.cmpi ne, %10, %c0_i32_9 : i32
    scf.if %11 {
      %c0_10 = arith.constant 0 : index
      %c0_11 = arith.constant 0 : index
      %12 = vector.load %arg6[%c0_10, %c0_11] : memref<16x64xf32, #tpu.memory_space<vmem>>, vector<16x64xf32>
      %c0_12 = arith.constant 0 : index
      %c0_13 = arith.constant 0 : index
      %13 = vector.load %arg5[%c0_12, %c0_13] : memref<16x64xf32, #tpu.memory_space<vmem>>, vector<16x64xf32>
      tpu.vector_store %arg5[%c0_12, %c0_13], %12 {strides = array<i32>} : memref<16x64xf32, #tpu.memory_space<vmem>>, vector<16x64xf32>,
    } else {
    }
    return
  }
  func.func @transform_0(%arg0: i32, %arg1: i32, %arg2: i32) -> (i32, i32) {
    %c0_i32 = arith.constant 0 : i32
    return %arg0, %arg2 : i32, i32
  }
  func.func @transform_1(%arg0: i32, %arg1: i32, %arg2: i32) -> (i32, i32) {
    %c0_i32 = arith.constant 0 : i32
    return %arg2, %arg1 : i32, i32
  }
  func.func @transform_2(%arg0: i32, %arg1: i32, %arg2: i32) -> (i32, i32) {
    %c0_i32 = arith.constant 0 : i32
    return %arg0, %arg1 : i32, i32
  }
}

</mosaic_0001>

<llo_original>
// kernel: linear_forward.1
$region0: #{linear_forward.1}
  #allocation0 [shape = 'u32[]', space=smem, size = 0x4, offset = 0x4, fixed_abs, tag = 'smem constant byte address 0x4 - core index']
  #allocation1 [shape = 'u32[144,128]{1,0:T(1,128)}', space=vmem, size = 0x12000, scoped, tag = 'internal scratch']
  #allocation2 [shape = 'f32[16,64]{1,0:T(8,128)}', space=vmem, size = 0x2000, scoped, tag = 'scratch operand']
  %s0 = inlined_call_operand.hbm [shape: f32[16,32], index: 0, kind: input, shape index: {}]
  %s1 = inlined_call_operand.hbm [shape: f32[32,64], index: 1, kind: input, shape index: {}]
  %s2 = inlined_call_operand.hbm [shape: f32[16,64], index: 2, kind: output, shape index: {}]
  %s3 = sld [smem:[#allocation0]]
  $region34: #{linear_forward.1} parent=0
    _
  %s5 = ssub.s32 1, %s3
  %s6 = scalar_select 0, %s5, %s3
  $region1: #{linear_forward.1} parent=0
    #allocation3 [shape = 'u8[8192]{0}', space=vmem, size = 0x2000, scoped, tag = 'input window, operand 0, single buffered']
    #allocation4 [shape = 's32[1]{0}', space=sflag, size = 0x4, scoped, tag = 'scoped memory for linear_forward.1']
    #allocation5 [shape = 's32[1]{0}', space=sflag, size = 0x4, scoped, tag = 'scoped memory for linear_forward.1']
    #allocation6 [shape = 'u8[16384]{0}', space=vmem, size = 0x4000, scoped, tag = 'input window, operand 1, single buffered']
    #allocation7 [shape = 's32[1]{0}', space=sflag, size = 0x4, scoped, tag = 'scoped memory for linear_forward.1']
    #allocation8 [shape = 'u8[8192]{0}', space=vmem, size = 0x2000, scoped, tag = 'output window, operand 0, single buffered']
    %7 = vsyncpa [#allocation4], 0
    %8 = vsyncpa [#allocation7], 0
    %9 = vsyncpa [#allocation5], 0
    // Predicated region
    $region2: #{linear_forward.1} parent=1 // pred_check
      _
    $region3: #{linear_forward.1} parent=1 // pred_check_branch
      %11 = sbr.rel (0) target = $region5
    $region4: #{linear_forward.1} parent=1 // pred_region
      %s13 = ssub.s32 256, 256
      %14 = vsyncadd [#allocation4], %s13
      %s15 = sshll.u32 [#allocation3], 4
      %s16 = int_to_ptr.vmem [resolvable:$true] %s15
      %21 = dma.hbm_to_vmem [thread:$0]  %s0, 256, %s16, [#allocation4], 128, 128, 8
    $region5: #{linear_forward.1} parent=1 // pred_fallthru
      _
    // Predicated region
    $region6: #{linear_forward.1} parent=1 // pred_check
      _
    $region7: #{linear_forward.1} parent=1 // pred_check_branch
      %23 = sbr.rel (0) target = $region9
    $region8: #{linear_forward.1} parent=1 // pred_region
      %s25 = ssub.s32 512, 512
      %26 = vsyncadd [#allocation7], %s25
      %s27 = sshll.u32 [#allocation6], 4
      %s28 = int_to_ptr.vmem [resolvable:$true] %s27
      %33 = dma.hbm_to_vmem [thread:$0]  %s1, 512, %s28, [#allocation7], 128, 128, 8
    $region9: #{linear_forward.1} parent=1 // pred_fallthru
      _
    // Predicated region
    $region10: #{linear_forward.1} parent=1 // pred_check
      _
    $region11: #{linear_forward.1} parent=1 // pred_check_branch
      %35 = sbr.rel (0) target = $region13
    $region12: #{linear_forward.1} parent=1 // pred_region
      %36 = dma.done [#allocation4], 256
    $region13: #{linear_forward.1} parent=1 // pred_fallthru
      _
    // Predicated region
    $region14: #{linear_forward.1} parent=1 // pred_check
      _
    $region15: #{linear_forward.1} parent=1 // pred_check_branch
      %38 = sbr.rel (0) target = $region17
    $region16: #{linear_forward.1} parent=1 // pred_region
      %39 = dma.done [#allocation7], 512
    $region17: #{linear_forward.1} parent=1 // pred_fallthru
      _
    %p40 = scmp.eq.s32.totalorder 0, 0
    // Predicated region
    $region18: #{linear_forward.1} parent=1 // pred_check
      %p41 = pneg %p40
    $region19: #{linear_forward.1} parent=1 // pred_check_branch
      %43 = sbr.rel (%p41) target = $region21
    $region20: #{linear_forward.1} parent=1 // pred_region
      %vm44 = vcmask 523264
      %45 = vst.msk [vmem:[#allocation2] sm:$0xff] %vm44, 0.0
      %46 = vst.msk [vmem:[#allocation2 + $0x8] sm:$0xff] %vm44, 0.0
    $region21: #{linear_forward.1} parent=1 // pred_fallthru
      _
    %v47 = vld [vmem:[#allocation2] sm:$0xff]
    %v48 = vld [vmem:[#allocation2 + $0x8] sm:$0xff]
    %v49 = vld [vmem:[#allocation3] sm:$0xff]
    %v50 = vld [vmem:[#allocation3 + $0x8] sm:$0xff]
    %v51 = vld [vmem:[#allocation6] sm:$0xff]
    %v52 = vld [vmem:[#allocation6 + $0x8] sm:$0xff]
    %v53 = vld [vmem:[#allocation6 + $0x10] sm:$0xff]
    %v54 = vld [vmem:[#allocation6 + $0x18] sm:$0xff]
    %vm55 = vcmask 261120
    %v57 = vsel %vm55, %v49, 0
    %v60 = vsel %vm55, %v50, 0
    %62 = vmatprep.subr.mxu0 0.0
    %63 = vmatpush1.msra.mxu0 %v51
    %64 = vmatprep.subr.mxu0 0.0
    %65 = vmatpush1.msra.mxu0 %v52
    %66 = vmatprep.subr.mxu0 0.0
    %67 = vmatpush1.msra.mxu0 %v53
    %68 = vmatprep.subr.mxu0 0.0
    %69 = vmatpush1.msra.mxu0 %v54
    %70 = vmatprep.subr.mxu0 0.0
    %71 = vmatpush1.msra.mxu0 0.0
    %72 = vmatprep.subr.mxu0 0.0
    %73 = vmatpush1.msra.mxu0 0.0
    %74 = vmatprep.subr.mxu0 0.0
    %75 = vmatpush1.msra.mxu0 0.0
    %76 = vmatprep.subr.mxu0 0.0
    %77 = vmatpush1.msra.mxu0 0.0
    %78 = vmatprep.subr.mxu0 0.0
    %79 = vmatpush1.msra.mxu0 0.0
    %80 = vmatprep.subr.mxu0 0.0
    %81 = vmatpush1.msra.mxu0 0.0
    %82 = vmatprep.subr.mxu0 0.0
    %83 = vmatpush1.msra.mxu0 0.0
    %84 = vmatprep.subr.mxu0 0.0
    %85 = vmatpush1.msra.mxu0 0.0
    %86 = vmatprep.subr.mxu0 0.0
    %87 = vmatpush1.msra.mxu0 0.0
    %88 = vmatprep.subr.mxu0 0.0
    %89 = vmatpush1.msra.mxu0 0.0
    %90 = vmatprep.subr.mxu0 0.0
    %91 = vmatpush1.msra.mxu0 0.0
    %92 = vmatprep.subr.mxu0 0.0
    %93 = vmatpush1.msra.mxu0 0.0
    %94 = vmatprep.subr.mxu0 0.0
    %95 = vmatpush1.msra.mxu0 0.0
    %96 = vmatprep.subr.mxu0 0.0
    %97 = vmatpush1.msra.mxu0 0.0
    %98 = vmatprep.subr.mxu0 0.0
    %99 = vmatpush1.msra.mxu0 0.0
    %100 = vmatprep.subr.mxu0 0.0
    %101 = vmatpush1.msra.mxu0 0.0
    %102 = vmatprep.subr.mxu0 0.0
    %103 = vmatpush1.msra.mxu0 0.0
    %104 = vmatprep.subr.mxu0 0.0
    %105 = vmatpush1.msra.mxu0 0.0
    %106 = vmatprep.subr.mxu0 0.0
    %107 = vmatpush1.msra.mxu0 0.0
    %108 = vmatprep.subr.mxu0 0.0
    %109 = vmatpush1.msra.mxu0 0.0
    %110 = vmatprep.subr.mxu0 0.0
    %111 = vmatpush1.msra.mxu0 0.0
    %112 = vmatprep.subr.mxu0 0.0
    %113 = vmatpush1.msra.mxu0 0.0
    %114 = vmatprep.subr.mxu0 0.0
    %115 = vmatpush1.msra.mxu0 0.0
    %116 = vmatprep.subr.mxu0 0.0
    %117 = vmatpush1.msra.mxu0 0.0
    %118 = vmatprep.subr.mxu0 0.0
    %119 = vmatpush1.msra.mxu0 0.0
    %120 = vmatprep.subr.mxu0 0.0
    %121 = vmatpush1.msra.mxu0 0.0
    %122 = vmatprep.subr.mxu0 0.0
    %123 = vmatpush1.msra.mxu0 0.0
    %124 = vmatprep.subr.mxu0 0.0
    %125 = vmatpush1.msra.mxu0 0.0
    %126 = vmatprep.mubr.f32.mxu0 0.0
    %127 = vmatmul.mubr.f32.gmra.mrb[0].mxu0 %v57
    %v128 = vpop.f32.mrb[0].mxu0
    %v129 = vadd.f32 0.0, %v128
    %v130 = vpop.f32.mrb[0].mxu0
    %131 = vmatprep.mubr.f32.mxu0 0.0
    %132 = vmatmul.mubr.f32.gmra.mrb[0].mxu0 %v60
    %v133 = vpop.f32.mrb[0].mxu0
    %v134 = vadd.f32 0.0, %v133
    %v135 = vpop.f32.mrb[0].mxu0
    %136 = vdwg.mxu0
    %v137 = vadd.f32 %v47, %v129
    %v138 = vadd.f32 %v48, %v134
    %vm139 = vcmask 523264
    %140 = vst.msk [vmem:[#allocation2] sm:$0xff] %vm139, %v137
    %141 = vst.msk [vmem:[#allocation2 + $0x8] sm:$0xff] %vm139, %v138
    // Predicated region
    $region22: #{linear_forward.1} parent=1 // pred_check
      %p142 = pneg %p40
    $region23: #{linear_forward.1} parent=1 // pred_check_branch
      %144 = sbr.rel (%p142) target = $region25
    $region24: #{linear_forward.1} parent=1 // pred_region
      %v145 = vld [vmem:[#allocation2] sm:$0xff]
      %v146 = vld [vmem:[#allocation2 + $0x8] sm:$0xff]
      %147 = vst.msk [vmem:[#allocation8] sm:$0xff] %vm139, %v145
      %148 = vst.msk [vmem:[#allocation8 + $0x8] sm:$0xff] %vm139, %v146
    $region25: #{linear_forward.1} parent=1 // pred_fallthru
      _
    // Predicated region
    $region26: #{linear_forward.1} parent=1 // pred_check
      _
    $region27: #{linear_forward.1} parent=1 // pred_check_branch
      %150 = sbr.rel (0) target = $region29
    $region28: #{linear_forward.1} parent=1 // pred_region
      %s152 = ssub.s32 256, 256
      %153 = vsyncadd [#allocation5], %s152
      %s154 = sshll.u32 [#allocation8], 4
      %s155 = int_to_ptr.vmem [resolvable:$true] %s154
      %160 = dma.vmem_to_hbm [thread:$0]  %s155, 256, %s2, [#allocation5], 128, 128, 8
    $region29: #{linear_forward.1} parent=1 // pred_fallthru
      _
    // Predicated region
    $region30: #{linear_forward.1} parent=1 // pred_check
      _
    $region31: #{linear_forward.1} parent=1 // pred_check_branch
      %162 = sbr.rel (0) target = $region33
    $region32: #{linear_forward.1} parent=1 // pred_region
      %163 = dma.done [#allocation5], 256
    $region33: #{linear_forward.1} parent=1 // pred_fallthru
      _
    %164 = vsyncpa [#allocation4], 1
    %165 = vsyncpa [#allocation7], 1
    %166 = vsyncpa [#allocation5], 1

</llo_original>
